<compile_context>
chip_gen: v6e
topology: v6e:2x2x1
jax: 0.10.0
libtpu: 0.0.40
codegen_flags: <defaults>
</compile_context>

<pallas_src>
import functools

import jax
import jax.numpy as jnp
from jax import lax
from jax.experimental import pallas as pl
from jax.experimental.pallas import tpu as pltpu

_LANES = 128
_ACC_ROWS = 256     # fixed accumulator height (multiple of 8)
_SUB = 32           # sublane multiple safe for f32 / bf16 / int8 inputs
_NUM_CORES = 2      # leading "parallel" grid axis (2 TCs on v7x; serial loop elsewhere)


def _cdiv(a, b):
    return -(-a // b)


def _imlm_kernel(beta, n_total, tile_rows, acc_rows, tiles_per_core, any_pad,
                 mult_ref, x0_ref, x1_ref, y_ref, out_ref,
                 sum_y_acc, neg_acc, pos_acc):
    c = pl.program_id(0)           # core-split axis ("parallel")
    i = pl.program_id(1)           # streaming axis ("arbitrary")

    @pl.when(i == 0)
    def _init():
        sum_y_acc[...] = jnp.zeros_like(sum_y_acc)
        neg_acc[...] = jnp.zeros_like(neg_acc)
        pos_acc[...] = jnp.zeros_like(pos_acc)

    # Upcast narrow inputs inside the kernel (HBM traffic stays at native width).
    y = y_ref[...].astype(jnp.float32)                    # [tile_rows, 128]
    x0 = jnp.exp(x0_ref[...].astype(jnp.float32))         # posteriors, class 0
    x1 = jnp.exp(x1_ref[...].astype(jnp.float32))         # posteriors, class 1

    # Optional softmax(beta * mult * x, dim=-1); static branch (matches self.beta > 0).
    # 2-class elementwise form: sigmoid of the scaled difference -> no cross-lane work;
    # approx reciprocal keeps the whole branch on the EUP slot.
    if beta > 0:
        scale = beta * mult_ref[0]
        d = jnp.exp(scale * (x1 - x0))                     # exp(z1 - z0)
        p0 = pl.reciprocal(1.0 + d, approx=True)
        x0 = p0
        x1 = 1.0 - p0

    k = tile_rows // acc_rows

    def fold(t):
        # Fold a (tile_rows, 128) tile onto the fixed (acc_rows, 128) accumulator
        # shape with a major-axis sum (plain vreg adds on the VPU; no XLU).
        if k == 1:
            return t
        return jnp.sum(t.reshape(k, acc_rows, _LANES), axis=0)

    # Steady-state work is purely elementwise.  y == 0 in the zero-padded tail, so
    # sum_y and the x0*y term never need masking.
    sum_y_acc[...] += fold(y)
    neg_acc[...] += fold(x0 * y)

    pos = x1 * (1.0 - y)
    if any_pad:
        tile_elems = tile_rows * _LANES
        tile_base = (c * tiles_per_core + i) * tile_elems

        @pl.when(tile_base + tile_elems <= n_total)        # steady state: no mask
        def _pos_unmasked():
            pos_acc[...] += fold(pos)

        @pl.when(tile_base + tile_elems > n_total)         # boundary/padded tiles only
        def _pos_masked():
            rows = lax.broadcasted_iota(jnp.int32, (tile_rows, _LANES), 0)
            lanes = lax.broadcasted_iota(jnp.int32, (tile_rows, _LANES), 1)
            gidx = tile_base + rows * _LANES + lanes
            pos_acc[...] += fold(jnp.where(gidx < n_total, pos, 0.0))
    else:
        pos_acc[...] += fold(pos)

    @pl.when(i == tiles_per_core - 1)
    def _finalize():
        r = acc_rows // 8

        def to_plane(a):
            # (acc_rows, 128) -> (8, 128) raw partial plane (VPU adds only).
            if r == 1:
                return a
            return jnp.sum(a.reshape(r, 8, _LANES), axis=0)

        # Raw (unnormalised) per-core partials; the wrapper combines the cores and
        # applies the sum(y) > 0 guard and the divisions.
        out_ref[0] = to_plane(sum_y_acc[...])
        out_ref[1] = to_plane(neg_acc[...])
        out_ref[2] = to_plane(pos_acc[...])


def imlm_loss_from_planes(x0, x1, y, *, mult, beta=0.0, tile_rows=2048):
    """ImlmLoss.forward on pre-split posterior planes.

    x0, x1: [N] log posteriors for class 0 / class 1 (any float dtype, bf16 welcome).
    y:      [N] labels in {0, 1} (any dtype; cast to f32 in-kernel).

    Producers that can emit the two planes (or a (2, N) layout) directly should call
    this entry point — it avoids the column-gather pass over x that imlm_loss() does.
    """
    x0 = jnp.reshape(x0, (-1,))
    x1 = jnp.reshape(x1, (-1,))
    y = jnp.reshape(y, (-1,))
    n = int(x0.shape[0])

    rows_needed = _cdiv(n, _LANES)
    per_core = _cdiv(rows_needed, _NUM_CORES)
    if per_core <= _ACC_ROWS:
        # Small inputs: one (small) tile per core; accumulator matches the tile.
        tiles_per_core = 1
        tile_rows_eff = max(_SUB, _cdiv(per_core, _SUB) * _SUB)
        acc_rows = tile_rows_eff
    else:
        # Large inputs: big streaming tiles (multiple of the fixed accumulator height),
        # shrunk to fit the row count tightly so padding stays small.
        req = max(_ACC_ROWS, (int(tile_rows) // _ACC_ROWS) * _ACC_ROWS)
        tiles_per_core = _cdiv(per_core, req)
        tile_rows_eff = _cdiv(_cdiv(per_core, tiles_per_core), _ACC_ROWS) * _ACC_ROWS
        acc_rows = _ACC_ROWS

    rows_pad = _NUM_CORES * tiles_per_core * tile_rows_eff
    n_pad = rows_pad * _LANES
    pad = n_pad - n

    if pad:
        x0 = jnp.pad(x0, (0, pad))
        x1 = jnp.pad(x1, (0, pad))
        y = jnp.pad(y, (0, pad))
    x0 = x0.reshape(rows_pad, _LANES)
    x1 = x1.reshape(rows_pad, _LANES)
    y2 = y.reshape(rows_pad, _LANES)

    mult_arr = jnp.asarray(mult, jnp.float32).reshape(1)

    kernel = functools.partial(
        _imlm_kernel, float(beta), int(n), int(tile_rows_eff), int(acc_rows),
        int(tiles_per_core), bool(pad > 0))

    # VMEM budget: 2 buffers per streamed input + fixed accumulators (+ headroom).
    blk_bytes = tile_rows_eff * _LANES * (x0.dtype.itemsize + x1.dtype.itemsize
                                          + y2.dtype.itemsize)
    acc_bytes = 3 * acc_rows * _LANES * 4
    vmem_need = 2 * blk_bytes + acc_bytes + 2 * (3 * 8 * _LANES * 4) + (1 << 20)
    vmem_limit = int(min(64 * 1024 * 1024, max(32 * 1024 * 1024, 2 * vmem_need)))

    bytes_accessed = int(x0.size * x0.dtype.itemsize + x1.size * x1.dtype.itemsize
                         + y2.size * y2.dtype.itemsize
                         + _NUM_CORES * 3 * 8 * _LANES * 4)
    transcendentals = int((3 if beta > 0 else 2) * n_pad)
    flops = int(8 * n_pad)

    partials = pl.pallas_call(
        kernel,
        out_shape=jax.ShapeDtypeStruct((_NUM_CORES * 3, 8, _LANES), jnp.float32),
        grid_spec=pltpu.PrefetchScalarGridSpec(
            num_scalar_prefetch=0,
            grid=(_NUM_CORES, tiles_per_core),
            in_specs=[
                # scalar parameter `mult` lives in SMEM (whole array, no tiling)
                pl.BlockSpec(memory_space=pltpu.MemorySpace.SMEM),
                pl.BlockSpec((tile_rows_eff, _LANES),
                             lambda c, i: (c * tiles_per_core + i, 0)),   # x[:,0]
                pl.BlockSpec((tile_rows_eff, _LANES),
                             lambda c, i: (c * tiles_per_core + i, 0)),   # x[:,1]
                pl.BlockSpec((tile_rows_eff, _LANES),
                             lambda c, i: (c * tiles_per_core + i, 0)),   # y
            ],
            # Per-core raw partial planes, resident across the "arbitrary" axis.
            out_specs=pl.BlockSpec((3, 8, _LANES), lambda c, i: (c, 0, 0)),
            scratch_shapes=[
                pltpu.VMEM((acc_rows, _LANES), jnp.float32),   # sum(y) partials
                pltpu.VMEM((acc_rows, _LANES), jnp.float32),   # x[:,0] * y partials
                pltpu.VMEM((acc_rows, _LANES), jnp.float32),   # x[:,1] * (1-y) partials
            ],
        ),
        compiler_params=pltpu.CompilerParams(
            dimension_semantics=("parallel", "arbitrary"),
            vmem_limit_bytes=vmem_limit),
        cost_estimate=pl.CostEstimate(
            flops=flops, transcendentals=transcendentals,
            bytes_accessed=bytes_accessed),
    )(mult_arr, x0, x1, y2)

    # Combine the cores' RAW partials first (per-core normalisation would be wrong),
    # then apply the sum(y) > 0 guard and divisions (tiny XLA op).
    p = jnp.sum(partials.reshape(_NUM_CORES, 3, 8, _LANES), axis=(0, 2, 3))
    sum_y, neg_sum, pos_sum = p[0], p[1], p[2]
    denom = jnp.where(sum_y > 0, sum_y, jnp.ones_like(sum_y))
    neg = jnp.where(sum_y > 0, neg_sum / denom, jnp.zeros_like(sum_y))
    pos = pos_sum / float(n)
    return neg + pos


def imlm_loss(x, y, *, mult, beta=0.0, tile_rows=2048):
    """Pallas implementation of ImlmLoss.forward(x, y) for x of shape [N, 2].

    Note: the column split below is one extra fused XLA pass over x.
    """
    n, c = x.shape
    assert c == 2, "ImlmLoss expects 2-class posteriors (columns 0 and 1)."
    # TODO(synk): accept x pre-split / as (2, N) from the producer to drop this pass.
    return imlm_loss_from_planes(x[:, 0], x[:, 1], y, mult=mult, beta=beta,
                                 tile_rows=tile_rows)


def imlm_ref(x, y, mult, beta):
    """Pure-JAX reference mirroring the PyTorch forward."""
    xe = jnp.exp(x.astype(jnp.float32))
    if beta > 0:
        xe = jax.nn.softmax(beta * mult * xe, axis=-1)
    yf = y.astype(jnp.float32).reshape(-1)
    sum_y = jnp.sum(yf)
    neg = jnp.where(sum_y > 0,
                    jnp.dot(xe[:, 0], yf) / jnp.where(sum_y > 0, sum_y, 1.0), 0.0)
    pos = jnp.dot(xe[:, 1], 1.0 - yf) / x.shape[0]
    return neg + pos


if __name__ == "__main__":
    key = jax.random.PRNGKey(0)
    kx, ky = jax.random.split(key)

    N, C = 300, 2                       # small, non-multiple-of-128 N exercises masking
    x = jax.random.normal(kx, (N, C), dtype=jnp.float32)           # log posteriors
    # labels kept in a narrow dtype; the kernel upcasts internally (no wrapper pre-cast)
    y = (jax.random.uniform(ky, (N,)) > 0.5).astype(jnp.bfloat16)

    # Deterministic parameter init, matching nn.Parameter(torch.tensor(1.0)).
    mult = jnp.float32(1.0)

    ok = True
    # beta=0.0 matches module defaults (smax_weight=0); beta=0.7 exercises the softmax
    # branch (looser tolerance because of the approx EUP reciprocal in the sigmoid).
    for beta, tol in ((0.0, 1e-5), (0.7, 2e-3)):
        out = jax.block_until_ready(imlm_loss(x, y, mult=mult, beta=beta))
        ref = imlm_ref(x, y, mult, beta)
        ok = ok and bool(jnp.allclose(out, ref, atol=tol, rtol=tol))

    if ok:
        print("KERNEL_OK")
    else:
        print("MISMATCH")
</pallas_src>

<mosaic_0001>
module attributes {stable_mosaic.version = 11 : i64} {
  func.func @_imlm_kernel(%arg0: i32, %arg1: i32, %arg2: memref<1xf32, #tpu.memory_space<smem>>, %arg3: memref<32x128xf32, #tpu.memory_space<vmem>>, %arg4: memref<32x128xf32, #tpu.memory_space<vmem>>, %arg5: memref<32x128xbf16, #tpu.memory_space<vmem>>, %arg6: memref<3x8x128xf32, #tpu.memory_space<vmem>>, %arg7: memref<32x128xf32, #tpu.memory_space<vmem>>, %arg8: memref<32x128xf32, #tpu.memory_space<vmem>>, %arg9: memref<32x128xf32, #tpu.memory_space<vmem>>) attributes {dimension_semantics = [#tpu.dimension_semantics<parallel>, #tpu.dimension_semantics<arbitrary>], iteration_bounds = array<i64: 2, 1>, scalar_prefetch = 0 : i64, scratch_operands = 3 : i64, tpu.core_type = #tpu.core_type<tc>, window_params = [{transform_indices = @transform_0, window_bounds = array<i64: 1>}, {transform_indices = @transform_1, window_bounds = array<i64: 32, 128>}, {transform_indices = @transform_2, window_bounds = array<i64: 32, 128>}, {transform_indices = @transform_3, window_bounds = array<i64: 32, 128>}, {transform_indices = @transform_4, window_bounds = array<i64: 3, 8, 128>}]} {
    %c0_i32 = arith.constant 0 : i32
    %0 = arith.cmpi eq, %arg1, %c0_i32 : i32
    %1 = arith.extui %0 : i1 to i32
    %c0_i32_0 = arith.constant 0 : i32
    %2 = arith.cmpi ne, %1, %c0_i32_0 : i32
    scf.if %2 {
      %cst_21 = arith.constant 0.000000e+00 : f32
      %33 = vector.broadcast %cst_21 : f32 to vector<32x128xf32>
      %c0_22 = arith.constant 0 : index
      %c0_23 = arith.constant 0 : index
      %34 = vector.load %arg7[%c0_22, %c0_23] : memref<32x128xf32, #tpu.memory_space<vmem>>, vector<32x128xf32>
      tpu.vector_store %arg7[%c0_22, %c0_23], %33 {strides = array<i32>} : memref<32x128xf32, #tpu.memory_space<vmem>>, vector<32x128xf32>,
      %cst_24 = arith.constant 0.000000e+00 : f32
      %35 = vector.broadcast %cst_24 : f32 to vector<32x128xf32>
      %c0_25 = arith.constant 0 : index
      %c0_26 = arith.constant 0 : index
      %36 = vector.load %arg8[%c0_25, %c0_26] : memref<32x128xf32, #tpu.memory_space<vmem>>, vector<32x128xf32>
      tpu.vector_store %arg8[%c0_25, %c0_26], %35 {strides = array<i32>} : memref<32x128xf32, #tpu.memory_space<vmem>>, vector<32x128xf32>,
      %cst_27 = arith.constant 0.000000e+00 : f32
      %37 = vector.broadcast %cst_27 : f32 to vector<32x128xf32>
      %c0_28 = arith.constant 0 : index
      %c0_29 = arith.constant 0 : index
      %38 = vector.load %arg9[%c0_28, %c0_29] : memref<32x128xf32, #tpu.memory_space<vmem>>, vector<32x128xf32>
      tpu.vector_store %arg9[%c0_28, %c0_29], %37 {strides = array<i32>} : memref<32x128xf32, #tpu.memory_space<vmem>>, vector<32x128xf32>,
    } else {
    }
    %c0 = arith.constant 0 : index
    %c0_1 = arith.constant 0 : index
    %3 = vector.load %arg5[%c0, %c0_1] : memref<32x128xbf16, #tpu.memory_space<vmem>>, vector<32x128xbf16>
    %4 = arith.extf %3 : vector<32x128xbf16> to vector<32x128xf32>
    %c0_2 = arith.constant 0 : index
    %c0_3 = arith.constant 0 : index
    %5 = vector.load %arg3[%c0_2, %c0_3] : memref<32x128xf32, #tpu.memory_space<vmem>>, vector<32x128xf32>
    %6 = math.exp %5 : vector<32x128xf32>
    %c0_4 = arith.constant 0 : index
    %c0_5 = arith.constant 0 : index
    %7 = vector.load %arg4[%c0_4, %c0_5] : memref<32x128xf32, #tpu.memory_space<vmem>>, vector<32x128xf32>
    %8 = math.exp %7 : vector<32x128xf32>
    %c0_6 = arith.constant 0 : index
    %c0_7 = arith.constant 0 : index
    %9 = vector.load %arg7[%c0_6, %c0_7] : memref<32x128xf32, #tpu.memory_space<vmem>>, vector<32x128xf32>
    %10 = arith.addf %9, %4 : vector<32x128xf32>
    %c0_8 = arith.constant 0 : index
    %c0_9 = arith.constant 0 : index
    %11 = vector.load %arg7[%c0_8, %c0_9] : memref<32x128xf32, #tpu.memory_space<vmem>>, vector<32x128xf32>
    tpu.vector_store %arg7[%c0_8, %c0_9], %10 {strides = array<i32>} : memref<32x128xf32, #tpu.memory_space<vmem>>, vector<32x128xf32>,
    %c0_10 = arith.constant 0 : index
    %c0_11 = arith.constant 0 : index
    %12 = vector.load %arg8[%c0_10, %c0_11] : memref<32x128xf32, #tpu.memory_space<vmem>>, vector<32x128xf32>
    %13 = arith.mulf %6, %4 : vector<32x128xf32>
    %14 = arith.addf %12, %13 : vector<32x128xf32>
    %c0_12 = arith.constant 0 : index
    %c0_13 = arith.constant 0 : index
    %15 = vector.load %arg8[%c0_12, %c0_13] : memref<32x128xf32, #tpu.memory_space<vmem>>, vector<32x128xf32>
    tpu.vector_store %arg8[%c0_12, %c0_13], %14 {strides = array<i32>} : memref<32x128xf32, #tpu.memory_space<vmem>>, vector<32x128xf32>,
    %cst = arith.constant 1.000000e+00 : f32
    %16 = vector.broadcast %cst : f32 to vector<32x128xf32>
    %17 = arith.subf %16, %4 : vector<32x128xf32>
    %18 = arith.mulf %8, %17 : vector<32x128xf32>
    %c1_i32 = arith.constant 1 : i32
    %19 = arith.muli %arg0, %c1_i32 : i32
    %20 = arith.addi %19, %arg1 : i32
    %c4096_i32 = arith.constant 4096 : i32
    %21 = arith.muli %20, %c4096_i32 : i32
    %c4096_i32_14 = arith.constant 4096 : i32
    %22 = arith.addi %21, %c4096_i32_14 : i32
    %c300_i32 = arith.constant 300 : i32
    %23 = arith.cmpi sle, %22, %c300_i32 : i32
    %24 = arith.extui %23 : i1 to i32
    %c0_i32_15 = arith.constant 0 : i32
    %25 = arith.cmpi ne, %24, %c0_i32_15 : i32
    scf.if %25 {
      %c0_21 = arith.constant 0 : index
      %c0_22 = arith.constant 0 : index
      %33 = vector.load %arg9[%c0_21, %c0_22] : memref<32x128xf32, #tpu.memory_space<vmem>>, vector<32x128xf32>
      %34 = arith.addf %33, %18 : vector<32x128xf32>
      %c0_23 = arith.constant 0 : index
      %c0_24 = arith.constant 0 : index
      %35 = vector.load %arg9[%c0_23, %c0_24] : memref<32x128xf32, #tpu.memory_space<vmem>>, vector<32x128xf32>
      tpu.vector_store %arg9[%c0_23, %c0_24], %34 {strides = array<i32>} : memref<32x128xf32, #tpu.memory_space<vmem>>, vector<32x128xf32>,
    } else {
    }
    %c4096_i32_16 = arith.constant 4096 : i32
    %26 = arith.addi %21, %c4096_i32_16 : i32
    %c300_i32_17 = arith.constant 300 : i32
    %27 = arith.cmpi sgt, %26, %c300_i32_17 : i32
    %28 = arith.extui %27 : i1 to i32
    %c0_i32_18 = arith.constant 0 : i32
    %29 = arith.cmpi ne, %28, %c0_i32_18 : i32
    scf.if %29 {
      %33 = tpu.iota {dimensions = array<i32: 0>} : vector<32x128xi32>
      %34 = tpu.iota {dimensions = array<i32: 1>} : vector<32x128xi32>
      %c128_i32 = arith.constant 128 : i32
      %35 = vector.broadcast %c128_i32 : i32 to vector<32x128xi32>
      %36 = arith.muli %33, %35 : vector<32x128xi32>
      %37 = vector.broadcast %21 : i32 to vector<32x128xi32>
      %38 = arith.addi %37, %36 : vector<32x128xi32>
      %39 = arith.addi %38, %34 : vector<32x128xi32>
      %c0_21 = arith.constant 0 : index
      %c0_22 = arith.constant 0 : index
      %40 = vector.load %arg9[%c0_21, %c0_22] : memref<32x128xf32, #tpu.memory_space<vmem>>, vector<32x128xf32>
      %c300_i32_23 = arith.constant 300 : i32
      %41 = vector.broadcast %c300_i32_23 : i32 to vector<32x128xi32>
      %42 = arith.cmpi slt, %39, %41 : vector<32x128xi32>
      %cst_24 = arith.constant 0.000000e+00 : f32
      %43 = vector.broadcast %cst_24 : f32 to vector<32x128xf32>
      %44 = arith.select %42, %18, %43 : vector<32x128xi1>, vector<32x128xf32>
      %45 = arith.addf %40, %44 : vector<32x128xf32>
      %c0_25 = arith.constant 0 : index
      %c0_26 = arith.constant 0 : index
      %46 = vector.load %arg9[%c0_25, %c0_26] : memref<32x128xf32, #tpu.memory_space<vmem>>, vector<32x128xf32>
      tpu.vector_store %arg9[%c0_25, %c0_26], %45 {strides = array<i32>} : memref<32x128xf32, #tpu.memory_space<vmem>>, vector<32x128xf32>,
    } else {
    }
    %c0_i32_19 = arith.constant 0 : i32
    %30 = arith.cmpi eq, %arg1, %c0_i32_19 : i32
    %31 = arith.extui %30 : i1 to i32
    %c0_i32_20 = arith.constant 0 : i32
    %32 = arith.cmpi ne, %31, %c0_i32_20 : i32
    scf.if %32 {
      %c0_21 = arith.constant 0 : index
      %c0_22 = arith.constant 0 : index
      %33 = vector.load %arg7[%c0_21, %c0_22] : memref<32x128xf32, #tpu.memory_space<vmem>>, vector<32x128xf32>
      %34 = vector.shape_cast %33 : vector<32x128xf32> to vector<4x8x128xf32>
      %cst_23 = arith.constant dense<0.000000e+00> : vector<8x128xf32>
      %35 = vector.multi_reduction <add>, %34, %cst_23 [0] : vector<4x8x128xf32> to vector<8x128xf32>
      %c0_24 = arith.constant 0 : index
      %c0_25 = arith.constant 0 : index
      %c0_26 = arith.constant 0 : index
      %36 = vector.load %arg6[%c0_24, %c0_25, %c0_26] : memref<3x8x128xf32, #tpu.memory_space<vmem>>, vector<1x8x128xf32>
      %37 = vector.shape_cast %36 : vector<1x8x128xf32> to vector<8x128xf32>
      %38 = vector.shape_cast %35 : vector<8x128xf32> to vector<1x8x128xf32>
      tpu.vector_store %arg6[%c0_24, %c0_25, %c0_26], %38 {strides = array<i32>} : memref<3x8x128xf32, #tpu.memory_space<vmem>>, vector<1x8x128xf32>,
      %c0_27 = arith.constant 0 : index
      %c0_28 = arith.constant 0 : index
      %39 = vector.load %arg8[%c0_27, %c0_28] : memref<32x128xf32, #tpu.memory_space<vmem>>, vector<32x128xf32>
      %40 = vector.shape_cast %39 : vector<32x128xf32> to vector<4x8x128xf32>
      %cst_29 = arith.constant dense<0.000000e+00> : vector<8x128xf32>
      %41 = vector.multi_reduction <add>, %40, %cst_29 [0] : vector<4x8x128xf32> to vector<8x128xf32>
      %c1 = arith.constant 1 : index
      %c0_30 = arith.constant 0 : index
      %c0_31 = arith.constant 0 : index
      %42 = vector.load %arg6[%c1, %c0_30, %c0_31] : memref<3x8x128xf32, #tpu.memory_space<vmem>>, vector<1x8x128xf32>
      %43 = vector.shape_cast %42 : vector<1x8x128xf32> to vector<8x128xf32>
      %44 = vector.shape_cast %41 : vector<8x128xf32> to vector<1x8x128xf32>
      tpu.vector_store %arg6[%c1, %c0_30, %c0_31], %44 {strides = array<i32>} : memref<3x8x128xf32, #tpu.memory_space<vmem>>, vector<1x8x128xf32>,
      %c0_32 = arith.constant 0 : index
      %c0_33 = arith.constant 0 : index
      %45 = vector.load %arg9[%c0_32, %c0_33] : memref<32x128xf32, #tpu.memory_space<vmem>>, vector<32x128xf32>
      %46 = vector.shape_cast %45 : vector<32x128xf32> to vector<4x8x128xf32>
      %cst_34 = arith.constant dense<0.000000e+00> : vector<8x128xf32>
      %47 = vector.multi_reduction <add>, %46, %cst_34 [0] : vector<4x8x128xf32> to vector<8x128xf32>
      %c2 = arith.constant 2 : index
      %c0_35 = arith.constant 0 : index
      %c0_36 = arith.constant 0 : index
      %48 = vector.load %arg6[%c2, %c0_35, %c0_36] : memref<3x8x128xf32, #tpu.memory_space<vmem>>, vector<1x8x128xf32>
      %49 = vector.shape_cast %48 : vector<1x8x128xf32> to vector<8x128xf32>
      %50 = vector.shape_cast %47 : vector<8x128xf32> to vector<1x8x128xf32>
      tpu.vector_store %arg6[%c2, %c0_35, %c0_36], %50 {strides = array<i32>} : memref<3x8x128xf32, #tpu.memory_space<vmem>>, vector<1x8x128xf32>,
    } else {
    }
    return
  }
  func.func @transform_0(%arg0: i32, %arg1: i32) -> i32 {
    %c0_i32 = arith.constant 0 : i32
    %c0_i32_0 = arith.constant 0 : i32
    return %c0_i32 : i32
  }
  func.func @transform_1(%arg0: i32, %arg1: i32) -> (i32, i32) {
    %c1_i32 = arith.constant 1 : i32
    %0 = arith.muli %arg0, %c1_i32 : i32
    %1 = arith.addi %0, %arg1 : i32
    %c0_i32 = arith.constant 0 : i32
    %c0_i32_0 = arith.constant 0 : i32
    return %1, %c0_i32 : i32, i32
  }
  func.func @transform_2(%arg0: i32, %arg1: i32) -> (i32, i32) {
    %c1_i32 = arith.constant 1 : i32
    %0 = arith.muli %arg0, %c1_i32 : i32
    %1 = arith.addi %0, %arg1 : i32
    %c0_i32 = arith.constant 0 : i32
    %c0_i32_0 = arith.constant 0 : i32
    return %1, %c0_i32 : i32, i32
  }
  func.func @transform_3(%arg0: i32, %arg1: i32) -> (i32, i32) {
    %c1_i32 = arith.constant 1 : i32
    %0 = arith.muli %arg0, %c1_i32 : i32
    %1 = arith.addi %0, %arg1 : i32
    %c0_i32 = arith.constant 0 : i32
    %c0_i32_0 = arith.constant 0 : i32
    return %1, %c0_i32 : i32, i32
  }
  func.func @transform_4(%arg0: i32, %arg1: i32) -> (i32, i32, i32) {
    %c0_i32 = arith.constant 0 : i32
    %c0_i32_0 = arith.constant 0 : i32
    %c0_i32_1 = arith.constant 0 : i32
    return %arg0, %c0_i32, %c0_i32_0 : i32, i32, i32
  }
}

</mosaic_0001>

<llo_original>
// kernel: tpu_custom_call.1
$region0: #{tpu_custom_call.1}
  #allocation0 [shape = 'u32[]', space=smem, size = 0x4, offset = 0x4, fixed_abs, tag = 'smem constant byte address 0x4 - core index']
  #allocation1 [shape = 'u32[144,128]{1,0:T(1,128)}', space=vmem, size = 0x12000, scoped, tag = 'internal scratch']
  #allocation2 [shape = 'f32[32,128]{1,0:T(8,128)}', space=vmem, size = 0x4000, scoped, tag = 'scratch operand']
  #allocation3 [shape = 'f32[32,128]{1,0:T(8,128)}', space=vmem, size = 0x4000, scoped, tag = 'scratch operand']
  #allocation4 [shape = 'f32[32,128]{1,0:T(8,128)}', space=vmem, size = 0x4000, scoped, tag = 'scratch operand']
  #allocation5 [shape = 'f32[1]{0:T(128)S(6)}', space=smem, size = 0x200, scoped, tag = 'scoped memory for tpu_custom_call.1']
  %s0 = inlined_call_operand.<no memory space> [shape: f32[1], index: 0, kind: input, shape index: {}]
  %s1 = inlined_call_operand.hbm [shape: f32[64,128], index: 1, kind: input, shape index: {}]
  %s2 = inlined_call_operand.hbm [shape: f32[64,128], index: 2, kind: input, shape index: {}]
  %s3 = inlined_call_operand.hbm [shape: bf16[64,128], index: 3, kind: input, shape index: {}]
  %s4 = inlined_call_operand.hbm [shape: f32[6,8,128], index: 4, kind: output, shape index: {}]
  %s5 = sld [smem:[#allocation0]]
  $region77: #{tpu_custom_call.1} parent=0
    _
  %s7 = ssub.s32 1, %s5
  %s8 = scalar_select 0, %s7, %s5
  %9 = sst [smem:[#allocation5]] %s0
  $region1: #{tpu_custom_call.1} parent=0
    #allocation6 [shape = 'u8[32768]{0}', space=vmem, size = 0x8000, scoped, tag = 'input window, operand 1']
    #allocation7 [shape = 's32[2]{0}', space=sflag, size = 0x8, scoped, tag = 'scoped memory for tpu_custom_call.1']
    #allocation8 [shape = 's32[2]{0}', space=sflag, size = 0x8, scoped, tag = 'scoped memory for tpu_custom_call.1']
    #allocation9 [shape = 'u8[32768]{0}', space=vmem, size = 0x8000, scoped, tag = 'input window, operand 2']
    #allocation10 [shape = 's32[2]{0}', space=sflag, size = 0x8, scoped, tag = 'scoped memory for tpu_custom_call.1']
    #allocation11 [shape = 'u8[16384]{0}', space=vmem, size = 0x4000, scoped, tag = 'input window, operand 3']
    #allocation12 [shape = 'u8[24576]{0}', space=vmem, size = 0x6000, scoped, tag = 'output window, operand 0']
    %10 = vsyncpa [#allocation7], 0
    %s11 = scalar_lea.sflag [#allocation7], 1
    %12 = vsyncpa %s11, 0
    %13 = vsyncpa [#allocation10], 0
    %s14 = scalar_lea.sflag [#allocation10], 1
    %15 = vsyncpa %s14, 0
    %16 = vsyncpa [#allocation8], 0
    %s17 = scalar_lea.sflag [#allocation8], 1
    %18 = vsyncpa %s17, 0
    loop: start=0, step=1, limit=4
    $region2: #{tpu_custom_call.1} parent=1 // loop_pre_header
      _
    $region3: #{tpu_custom_call.1} parent=1 // loop_header
      %s20 = sphi 0, %s24
      %p21 = scmp.ge.s32.totalorder %s20, 4
      %s27 = sphi 0, %s39
      %s28 = sphi 0, %s35
      %s29 = sphi 0, %s27
      %s30 = sphi 0, %s28
      %s31 = sphi 0, %s29
      %s32 = sphi 0, %s30
      %s40 = sphi 0, %s40
      %s42 = sphi 0, %s40
      %s43 = sphi 0, %s42
      %s57 = sphi 0, %s43
      %s65 = sphi 0, %s67
      %s68 = sphi 0, %s65
      %s69 = sphi 0, %s68
      %s85 = sphi 0, %s69
      %s93 = sphi 0, %s95
      %s96 = sphi 0, %s93
      %s97 = sphi 0, %s96
      %s113 = sphi 0, %s97
      %s121 = sphi 0, %s123
      %s124 = sphi 0, %s121
      %s125 = sphi 0, %s124
      %s141 = sphi 0, %s125
      %s147 = sphi 0, %s149
      %s150 = sphi 0, %s147
      %s151 = sphi 0, %s150
      %s167 = sphi 0, %s151
    $region4: #{tpu_custom_call.1} parent=1 // loop_header_branch
      %23 = sbr.rel (%p21) target = $region8
    $region5: #{tpu_custom_call.1} parent=1 // loop_body
      %s25 = ssub.s32 %s20, 1
      %s26 = ssub.s32 %s20, 2
      %s33 = sadd.s32 1, %s28
      %p34 = scmp.ge.s32.totalorder %s33, 1
      %s35 = scalar_select %p34, 0, %s33
      %s36 = sadd.s32 1, %s27
      %s37 = scalar_select %p34, %s36, %s27
      %p38 = scmp.ge.s32.totalorder %s37, 2
      %s39 = scalar_select %p38, 0, %s37
      %s41 = sadd.s32 %s40, 1
      %p44 = scmp.eq.s32.totalorder %s20, 1
      %p45 = scmp.ne.s32.totalorder %s40, %s42
      %p46 = scmp.eq.s32.totalorder %s20, 0
      %p47 = por %p45, %p46
      %p48 = scmp.ne.s32.totalorder %s40, %s42
      %p49 = scmp.eq.s32.totalorder %s25, 1
      %p50 = por %p48, %p49
      %p51 = scmp.ne.s32.totalorder %s42, %s43
      %p52 = scmp.eq.s32.totalorder %s25, 0
      %p53 = por %p51, %p52
      %p54 = scmp.ne.s32.totalorder %s42, %s43
      %p55 = scmp.eq.s32.totalorder %s26, 1
      %p56 = por %p54, %p55
      %p58 = scmp.ne.s32.totalorder %s43, %s57
      %p59 = scmp.eq.s32.totalorder %s26, 0
      %p60 = por %p58, %p59
      %s61 = sadd.s32 %s27, %s28
      %s62 = sadd.s32 %s39, %s35
      %s63 = ssub.s32 %s61, %s62
      %p64 = scmp.eq.s32.totalorder %s63, 0
      %s66 = sadd.s32 %s65, 1
      %s67 = scalar_select %p64, %s65, %s66
      %p70 = pneg %p64
      %p71 = scmp.eq.s32.totalorder %s20, 1
      %p72 = por %p70, %p71
      %p73 = scmp.ne.s32.totalorder %s65, %s68
      %p74 = scmp.eq.s32.totalorder %s20, 0
      %p75 = por %p73, %p74
      %p76 = scmp.ne.s32.totalorder %s65, %s68
      %p77 = scmp.eq.s32.totalorder %s25, 1
      %p78 = por %p76, %p77
      %p79 = scmp.ne.s32.totalorder %s68, %s69
      %p80 = scmp.eq.s32.totalorder %s25, 0
      %p81 = por %p79, %p80
      %p82 = scmp.ne.s32.totalorder %s68, %s69
      %p83 = scmp.eq.s32.totalorder %s26, 1
      %p84 = por %p82, %p83
      %p86 = scmp.ne.s32.totalorder %s69, %s85
      %p87 = scmp.eq.s32.totalorder %s26, 0
      %p88 = por %p86, %p87
      %s89 = sadd.s32 %s27, %s28
      %s90 = sadd.s32 %s39, %s35
      %s91 = ssub.s32 %s89, %s90
      %p92 = scmp.eq.s32.totalorder %s91, 0
      %s94 = sadd.s32 %s93, 1
      %s95 = scalar_select %p92, %s93, %s94
      %p98 = pneg %p92
      %p99 = scmp.eq.s32.totalorder %s20, 1
      %p100 = por %p98, %p99
      %p101 = scmp.ne.s32.totalorder %s93, %s96
      %p102 = scmp.eq.s32.totalorder %s20, 0
      %p103 = por %p101, %p102
      %p104 = scmp.ne.s32.totalorder %s93, %s96
      %p105 = scmp.eq.s32.totalorder %s25, 1
      %p106 = por %p104, %p105
      %p107 = scmp.ne.s32.totalorder %s96, %s97
      %p108 = scmp.eq.s32.totalorder %s25, 0
      %p109 = por %p107, %p108
      %p110 = scmp.ne.s32.totalorder %s96, %s97
      %p111 = scmp.eq.s32.totalorder %s26, 1
      %p112 = por %p110, %p111
      %p114 = scmp.ne.s32.totalorder %s97, %s113
      %p115 = scmp.eq.s32.totalorder %s26, 0
      %p116 = por %p114, %p115
      %s117 = sadd.s32 %s27, %s28
      %s118 = sadd.s32 %s39, %s35
      %s119 = ssub.s32 %s117, %s118
      %p120 = scmp.eq.s32.totalorder %s119, 0
      %s122 = sadd.s32 %s121, 1
      %s123 = scalar_select %p120, %s121, %s122
      %p126 = pneg %p120
      %p127 = scmp.eq.s32.totalorder %s20, 1
      %p128 = por %p126, %p127
      %p129 = scmp.ne.s32.totalorder %s121, %s124
      %p130 = scmp.eq.s32.totalorder %s20, 0
      %p131 = por %p129, %p130
      %p132 = scmp.ne.s32.totalorder %s121, %s124
      %p133 = scmp.eq.s32.totalorder %s25, 1
      %p134 = por %p132, %p133
      %p135 = scmp.ne.s32.totalorder %s124, %s125
      %p136 = scmp.eq.s32.totalorder %s25, 0
      %p137 = por %p135, %p136
      %p138 = scmp.ne.s32.totalorder %s124, %s125
      %p139 = scmp.eq.s32.totalorder %s26, 1
      %p140 = por %p138, %p139
      %p142 = scmp.ne.s32.totalorder %s125, %s141
      %p143 = scmp.eq.s32.totalorder %s26, 0
      %p144 = por %p142, %p143
      %s145 = ssub.s32 %s27, %s39
      %p146 = scmp.eq.s32.totalorder %s145, 0
      %s148 = sadd.s32 %s147, 1
      %s149 = scalar_select %p146, %s147, %s148
      %p152 = pneg %p146
      %p153 = scmp.eq.s32.totalorder %s20, 1
      %p154 = por %p152, %p153
      %p155 = scmp.ne.s32.totalorder %s147, %s150
      %p156 = scmp.eq.s32.totalorder %s20, 0
      %p157 = por %p155, %p156
      %p158 = scmp.ne.s32.totalorder %s147, %s150
      %p159 = scmp.eq.s32.totalorder %s25, 1
      %p160 = por %p158, %p159
      %p161 = scmp.ne.s32.totalorder %s150, %s151
      %p162 = scmp.eq.s32.totalorder %s25, 0
      %p163 = por %p161, %p162
      %p164 = scmp.ne.s32.totalorder %s150, %s151
      %p165 = scmp.eq.s32.totalorder %s26, 1
      %p166 = por %p164, %p165
      %p168 = scmp.ne.s32.totalorder %s151, %s167
      %p169 = scmp.eq.s32.totalorder %s26, 0
      %p170 = por %p168, %p169
      %p171 = scmp.le.s32.totalorder 1, %s20
      %p172 = scmp.lt.s32.totalorder %s20, 3
      %p173 = pnand %p171, %p172
      %p174 = pneg %p173
      // Predicated region
      $region9: #{tpu_custom_call.1} parent=5 // pred_check
        _
      $region10: #{tpu_custom_call.1} parent=5 // pred_check_branch
        %176 = sbr.rel (%p173) target = $region12
      $region11: #{tpu_custom_call.1} parent=5 // pred_region
        %s177 = ssub.s32 %s20, 1
        // Predicated region
        $region13: #{tpu_custom_call.1} parent=11 // pred_check
          %p178 = pneg %p53
        $region14: #{tpu_custom_call.1} parent=11 // pred_check_branch
          %180 = sbr.rel (%p178) target = $region16
        $region15: #{tpu_custom_call.1} parent=11 // pred_region
          _
        $region16: #{tpu_custom_call.1} parent=11 // pred_fallthru
          _
      $region12: #{tpu_custom_call.1} parent=5 // pred_fallthru
        _
      %p181 = scmp.lt.s32.totalorder %s20, 2
      // Predicated region
      $region17: #{tpu_custom_call.1} parent=5 // pred_check
        %p182 = pneg %p181
      $region18: #{tpu_custom_call.1} parent=5 // pred_check_branch
        %184 = sbr.rel (%p182) target = $region20
      $region19: #{tpu_custom_call.1} parent=5 // pred_region
        // Predicated region
        $region21: #{tpu_custom_call.1} parent=19 // pred_check
          %p185 = pneg %p75
        $region22: #{tpu_custom_call.1} parent=19 // pred_check_branch
          %187 = sbr.rel (%p185) target = $region24
        $region23: #{tpu_custom_call.1} parent=19 // pred_region
          %s188 = sand.u32 %s65, 1
          %s189 = scalar_lea.sflag [#allocation7], %s188
          %s190 = sand.u32 %s65, 1
          %s191 = smul.addr %s190, 32
          %s192 = scalar_lea.vmem [#allocation6], %s191
          %s193 = sadd.s32 %s27, %s28
          %s194 = smul.u32 4, %s193
          %s196 = ssub.s32 512, 512
          %197 = vsyncadd %s189, %s196
          %s198 = smul.addr %s194, 128
          %s199 = scalar_lea.hbm %s1, %s198
          %s200 = sshll.u32 %s192, 4
          %s201 = int_to_ptr.vmem [resolvable:$true] %s200
          %206 = dma.hbm_to_vmem [thread:$0]  %s199, 512, %s201, %s189, 128, 128, 8
        $region24: #{tpu_custom_call.1} parent=19 // pred_fallthru
          _
        // Predicated region
        $region25: #{tpu_custom_call.1} parent=19 // pred_check
          %p207 = pneg %p103
        $region26: #{tpu_custom_call.1} parent=19 // pred_check_branch
          %209 = sbr.rel (%p207) target = $region28
        $region27: #{tpu_custom_call.1} parent=19 // pred_region
          %s210 = sand.u32 %s20, 1
          %s211 = scalar_lea.sflag [#allocation10], %s210
          %s212 = sand.u32 %s93, 1
          %s213 = smul.addr %s212, 32
          %s214 = scalar_lea.vmem [#allocation9], %s213
          %s215 = sadd.s32 %s27, %s28
          %s216 = smul.u32 4, %s215
          %s218 = ssub.s32 512, 512
          %219 = vsyncadd %s211, %s218
          %s220 = smul.addr %s216, 128
          %s221 = scalar_lea.hbm %s2, %s220
          %s222 = sshll.u32 %s214, 4
          %s223 = int_to_ptr.vmem [resolvable:$true] %s222
          %228 = dma.hbm_to_vmem [thread:$0]  %s221, 512, %s223, %s211, 128, 128, 8
        $region28: #{tpu_custom_call.1} parent=19 // pred_fallthru
          _
        // Predicated region
        $region29: #{tpu_custom_call.1} parent=19 // pred_check
          %p229 = pneg %p131
        $region30: #{tpu_custom_call.1} parent=19 // pred_check_branch
          %231 = sbr.rel (%p229) target = $region32
        $region31: #{tpu_custom_call.1} parent=19 // pred_region
          %s232 = sand.u32 %s20, 1
          %s233 = scalar_lea.sflag [#allocation10], %s232
          %s234 = sand.u32 %s121, 1
          %s235 = smul.addr %s234, 16
          %s236 = scalar_lea.vmem [#allocation11], %s235
          %s237 = sadd.s32 %s27, %s28
          %s238 = smul.u32 4, %s237
          %s240 = ssub.s32 256, 256
          %241 = vsyncadd %s233, %s240
          %s242 = smul.addr %s238, 64
          %s243 = scalar_lea.hbm %s3, %s242
          %s244 = sshll.u32 %s236, 4
          %s245 = int_to_ptr.vmem [resolvable:$true] %s244
          %250 = dma.hbm_to_vmem [thread:$0]  %s243, 256, %s245, %s233, 64, 64, 4
        $region32: #{tpu_custom_call.1} parent=19 // pred_fallthru
          _
      $region20: #{tpu_custom_call.1} parent=5 // pred_fallthru
        _
      %p251 = scmp.le.s32.totalorder 1, %s20
      %p252 = scmp.lt.s32.totalorder %s20, 3
      %p253 = pnand %p251, %p252
      %p254 = pneg %p253
      // Predicated region
      $region33: #{tpu_custom_call.1} parent=5 // pred_check
        _
      $region34: #{tpu_custom_call.1} parent=5 // pred_check_branch
        %256 = sbr.rel (%p253) target = $region36
      $region35: #{tpu_custom_call.1} parent=5 // pred_region
        %s257 = ssub.s32 %s20, 1
        %s258 = sand.u32 %s68, 1
        %s259 = scalar_lea.sflag [#allocation7], %s258
        %s260 = sand.u32 %s68, 1
        %s261 = smul.addr %s260, 32
        %s262 = scalar_lea.vmem [#allocation6], %s261
        // Predicated region
        $region37: #{tpu_custom_call.1} parent=35 // pred_check
          %p263 = pneg %p81
        $region38: #{tpu_custom_call.1} parent=35 // pred_check_branch
          %265 = sbr.rel (%p263) target = $region40
        $region39: #{tpu_custom_call.1} parent=35 // pred_region
          %266 = dma.done %s259, 512
        $region40: #{tpu_custom_call.1} parent=35 // pred_fallthru
          _
        %s267 = sand.u32 %s25, 1
        %s268 = scalar_lea.sflag [#allocation10], %s267
        %s269 = sand.u32 %s96, 1
        %s270 = smul.addr %s269, 32
        %s271 = scalar_lea.vmem [#allocation9], %s270
        // Predicated region
        $region41: #{tpu_custom_call.1} parent=35 // pred_check
          %p272 = pneg %p109
        $region42: #{tpu_custom_call.1} parent=35 // pred_check_branch
          %274 = sbr.rel (%p272) target = $region44
        $region43: #{tpu_custom_call.1} parent=35 // pred_region
          %275 = dma.done %s268, 512
        $region44: #{tpu_custom_call.1} parent=35 // pred_fallthru
          _
        %s276 = sand.u32 %s25, 1
        %s277 = scalar_lea.sflag [#allocation10], %s276
        %s278 = sand.u32 %s124, 1
        %s279 = smul.addr %s278, 16
        %s280 = scalar_lea.vmem [#allocation11], %s279
        // Predicated region
        $region45: #{tpu_custom_call.1} parent=35 // pred_check
          %p281 = pneg %p137
        $region46: #{tpu_custom_call.1} parent=35 // pred_check_branch
          %283 = sbr.rel (%p281) target = $region48
        $region47: #{tpu_custom_call.1} parent=35 // pred_region
          %284 = dma.done %s277, 256
        $region48: #{tpu_custom_call.1} parent=35 // pred_fallthru
          _
        %p285 = pneg %p53
        %p286 = pneg %p50
        %s287 = sand.u32 %s68, 1
        %s288 = scalar_lea.sflag [#allocation7], %s287
        %s289 = sand.u32 %s68, 1
        %s290 = smul.addr %s289, 32
        %s291 = scalar_lea.vmem [#allocation6], %s290
        %p292 = pneg %p81
        %p293 = pneg %p78
        %s294 = sand.u32 %s25, 1
        %s295 = scalar_lea.sflag [#allocation10], %s294
        %s296 = sand.u32 %s96, 1
        %s297 = smul.addr %s296, 32
        %s298 = scalar_lea.vmem [#allocation9], %s297
        %p299 = pneg %p109
        %p300 = pneg %p106
        %s301 = sand.u32 %s25, 1
        %s302 = scalar_lea.sflag [#allocation10], %s301
        %s303 = sand.u32 %s124, 1
        %s304 = smul.addr %s303, 16
        %s305 = scalar_lea.vmem [#allocation11], %s304
        %p306 = pneg %p137
        %p307 = pneg %p134
        %p308 = pneg %p163
        %p309 = pneg %p160
        %s310 = sand.u32 %s150, 1
        %s311 = scalar_lea.sflag [#allocation8], %s310
        %s312 = sand.u32 %s150, 1
        %s313 = smul.addr %s312, 24
        %s314 = scalar_lea.vmem [#allocation12], %s313
        %s315 = sadd.s32 %s29, %s30
        %s316 = smul.u32 4, %s315
        %s317 = sadd.s32 %s29, %s30
        %s318 = smul.u32 4, %s317
        %s319 = sadd.s32 %s29, %s30
        %s320 = smul.u32 4, %s319
        %s321 = smul.u32 3, %s29
        %p322 = scmp.eq.s32.totalorder %s30, 0
        // Predicated region
        $region49: #{tpu_custom_call.1} parent=35 // pred_check
          %p323 = pneg %p322
        $region50: #{tpu_custom_call.1} parent=35 // pred_check_branch
          %325 = sbr.rel (%p323) target = $region52
        $region51: #{tpu_custom_call.1} parent=35 // pred_region
          %326 = vst [vmem:[#allocation2] sm:$0xff] 0.0
          %327 = vst [vmem:[#allocation2 + $0x8] sm:$0xff] 0.0
          %328 = vst [vmem:[#allocation2 + $0x10] sm:$0xff] 0.0
          %329 = vst [vmem:[#allocation2 + $0x18] sm:$0xff] 0.0
          %330 = vst [vmem:[#allocation3] sm:$0xff] 0.0
          %331 = vst [vmem:[#allocation3 + $0x8] sm:$0xff] 0.0
          %332 = vst [vmem:[#allocation3 + $0x10] sm:$0xff] 0.0
          %333 = vst [vmem:[#allocation3 + $0x18] sm:$0xff] 0.0
          %334 = vst [vmem:[#allocation4] sm:$0xff] 0.0
          %335 = vst [vmem:[#allocation4 + $0x8] sm:$0xff] 0.0
          %336 = vst [vmem:[#allocation4 + $0x10] sm:$0xff] 0.0
          %337 = vst [vmem:[#allocation4 + $0x18] sm:$0xff] 0.0
        $region52: #{tpu_custom_call.1} parent=35 // pred_fallthru
          _
        %v338 = vld [vmem:[%s280] sm:$0xf]
        %v339 = vld [vmem:[%s280 + $0x4] sm:$0xf]
        %v340 = vld [vmem:[%s280 + $0x8] sm:$0xf]
        %v341 = vld [vmem:[%s280 + $0xc] sm:$0xf]
        %v342 = vunpack.c.l.bf16 %v338
        %v343 = vunpack.c.l.bf16 %v339
        %v344 = vunpack.c.l.bf16 %v340
        %v345 = vunpack.c.l.bf16 %v341
        %v346 = vld [vmem:[%s262] sm:$0xff]
        %v347 = vld [vmem:[%s262 + $0x8] sm:$0xff]
        %v348 = vld [vmem:[%s262 + $0x10] sm:$0xff]
        %v349 = vld [vmem:[%s262 + $0x18] sm:$0xff]
        %v350 = vmul.f32 %v346, 1.442695
        %v351 = vpow.pop %v350
        %v352 = vmul.f32 %v347, 1.442695
        %v353 = vpow.pop %v352
        %v354 = vmul.f32 %v348, 1.442695
        %v355 = vpow.pop %v354
        %v356 = vmul.f32 %v349, 1.442695
        %v357 = vpow.pop %v356
        %v358 = vld [vmem:[%s271] sm:$0xff]
        %v359 = vld [vmem:[%s271 + $0x8] sm:$0xff]
        %v360 = vld [vmem:[%s271 + $0x10] sm:$0xff]
        %v361 = vld [vmem:[%s271 + $0x18] sm:$0xff]
        %v362 = vmul.f32 %v358, 1.442695
        %v363 = vpow.pop %v362
        %v364 = vmul.f32 %v359, 1.442695
        %v365 = vpow.pop %v364
        %v366 = vmul.f32 %v360, 1.442695
        %v367 = vpow.pop %v366
        %v368 = vmul.f32 %v361, 1.442695
        %v369 = vpow.pop %v368
        %v370 = vld [vmem:[#allocation2] sm:$0xff]
        %v371 = vld [vmem:[#allocation2 + $0x8] sm:$0xff]
        %v372 = vld [vmem:[#allocation2 + $0x10] sm:$0xff]
        %v373 = vld [vmem:[#allocation2 + $0x18] sm:$0xff]
        %v374 = vadd.f32 %v370, %v342
        %v375 = vadd.f32 %v371, %v343
        %v376 = vadd.f32 %v372, %v344
        %v377 = vadd.f32 %v373, %v345
        %378 = vst [vmem:[#allocation2] sm:$0xff] %v374
        %379 = vst [vmem:[#allocation2 + $0x8] sm:$0xff] %v375
        %380 = vst [vmem:[#allocation2 + $0x10] sm:$0xff] %v376
        %381 = vst [vmem:[#allocation2 + $0x18] sm:$0xff] %v377
        %v382 = vld [vmem:[#allocation3] sm:$0xff]
        %v383 = vld [vmem:[#allocation3 + $0x8] sm:$0xff]
        %v384 = vld [vmem:[#allocation3 + $0x10] sm:$0xff]
        %v385 = vld [vmem:[#allocation3 + $0x18] sm:$0xff]
        %v386 = vmul.f32 %v351, %v342
        %v387 = vmul.f32 %v353, %v343
        %v388 = vmul.f32 %v355, %v344
        %v389 = vmul.f32 %v357, %v345
        %v390 = vadd.f32 %v382, %v386
        %v391 = vadd.f32 %v383, %v387
        %v392 = vadd.f32 %v384, %v388
        %v393 = vadd.f32 %v385, %v389
        %394 = vst [vmem:[#allocation3] sm:$0xff] %v390
        %395 = vst [vmem:[#allocation3 + $0x8] sm:$0xff] %v391
        %396 = vst [vmem:[#allocation3 + $0x10] sm:$0xff] %v392
        %397 = vst [vmem:[#allocation3 + $0x18] sm:$0xff] %v393
        %v398 = vsub.f32 1.0, %v342
        %v399 = vsub.f32 1.0, %v343
        %v400 = vsub.f32 1.0, %v344
        %v401 = vsub.f32 1.0, %v345
        %v402 = vmul.f32 %v363, %v398
        %v403 = vmul.f32 %v365, %v399
        %v404 = vmul.f32 %v367, %v400
        %v405 = vmul.f32 %v369, %v401
        %s406 = sadd.s32 %s29, %s30
        %s407 = smul.u32 %s406, 4096
        %s408 = sadd.s32 %s407, 4096
        %p409 = scmp.le.s32.totalorder %s408, 300
        // Predicated region
        $region53: #{tpu_custom_call.1} parent=35 // pred_check
          %p410 = pneg %p409
        $region54: #{tpu_custom_call.1} parent=35 // pred_check_branch
          %412 = sbr.rel (%p410) target = $region56
        $region55: #{tpu_custom_call.1} parent=35 // pred_region
          %v413 = vld [vmem:[#allocation4] sm:$0xff]
          %v414 = vld [vmem:[#allocation4 + $0x8] sm:$0xff]
          %v415 = vld [vmem:[#allocation4 + $0x10] sm:$0xff]
          %v416 = vld [vmem:[#allocation4 + $0x18] sm:$0xff]
          %v417 = vadd.f32 %v413, %v402
          %v418 = vadd.f32 %v414, %v403
          %v419 = vadd.f32 %v415, %v404
          %v420 = vadd.f32 %v416, %v405
          %421 = vst [vmem:[#allocation4] sm:$0xff] %v417
          %422 = vst [vmem:[#allocation4 + $0x8] sm:$0xff] %v418
          %423 = vst [vmem:[#allocation4 + $0x10] sm:$0xff] %v419
          %424 = vst [vmem:[#allocation4 + $0x18] sm:$0xff] %v420
        $region56: #{tpu_custom_call.1} parent=35 // pred_fallthru
          _
        %p425 = scmp.gt.s32.totalorder %s408, 300
        // Predicated region
        $region57: #{tpu_custom_call.1} parent=35 // pred_check
          %p426 = pneg %p425
        $region58: #{tpu_custom_call.1} parent=35 // pred_check_branch
          %428 = sbr.rel (%p426) target = $region60
        $region59: #{tpu_custom_call.1} parent=35 // pred_region
          %v429 = vlaneseq
          %v430 = vshrl.u32 %v429, 7
          %v431 = vadd.s32 %v430, 8
          %v432 = vadd.s32 %v430, 16
          %v433 = vadd.s32 %v430, 24
          %v434 = vlaneseq
          %v435 = vand.u32 %v434, 127
          %v436 = vmul.u32 %v430, 128
          %v437 = vmul.u32 %v431, 128
          %v438 = vmul.u32 %v432, 128
          %v439 = vmul.u32 %v433, 128
          %v440 = vstv %s407
          %v441 = vadd.s32 %v440, %v436
          %v442 = vadd.s32 %v440, %v437
          %v443 = vadd.s32 %v440, %v438
          %v444 = vadd.s32 %v440, %v439
          %v445 = vadd.s32 %v441, %v435
          %v446 = vadd.s32 %v442, %v435
          %v447 = vadd.s32 %v443, %v435
          %v448 = vadd.s32 %v444, %v435
          %v449 = vld [vmem:[#allocation4] sm:$0xff]
          %v450 = vld [vmem:[#allocation4 + $0x8] sm:$0xff]
          %v451 = vld [vmem:[#allocation4 + $0x10] sm:$0xff]
          %v452 = vld [vmem:[#allocation4 + $0x18] sm:$0xff]
          %vm453 = vcmp.lt.s32.totalorder %v445, 300
          %vm454 = vcmp.lt.s32.totalorder %v446, 300
          %vm455 = vcmp.lt.s32.totalorder %v447, 300
          %vm456 = vcmp.lt.s32.totalorder %v448, 300
          %v457 = vsel %vm453, %v402, 0.0
          %v458 = vsel %vm454, %v403, 0.0
          %v459 = vsel %vm455, %v404, 0.0
          %v460 = vsel %vm456, %v405, 0.0
          %v461 = vadd.f32 %v449, %v457
          %v462 = vadd.f32 %v450, %v458
          %v463 = vadd.f32 %v451, %v459
          %v464 = vadd.f32 %v452, %v460
          %465 = vst [vmem:[#allocation4] sm:$0xff] %v461
          %466 = vst [vmem:[#allocation4 + $0x8] sm:$0xff] %v462
          %467 = vst [vmem:[#allocation4 + $0x10] sm:$0xff] %v463
          %468 = vst [vmem:[#allocation4 + $0x18] sm:$0xff] %v464
        $region60: #{tpu_custom_call.1} parent=35 // pred_fallthru
          _
        // Predicated region
        $region61: #{tpu_custom_call.1} parent=35 // pred_check
          %p469 = pneg %p322
        $region62: #{tpu_custom_call.1} parent=35 // pred_check_branch
          %471 = sbr.rel (%p469) target = $region64
        $region63: #{tpu_custom_call.1} parent=35 // pred_region
          %v472 = vld [vmem:[#allocation2] sm:$0xff]
          %v473 = vld [vmem:[#allocation2 + $0x8] sm:$0xff]
          %v474 = vld [vmem:[#allocation2 + $0x10] sm:$0xff]
          %v475 = vld [vmem:[#allocation2 + $0x18] sm:$0xff]
          %v476 = vadd.f32 %v472, %v473
          %v477 = vadd.f32 %v476, %v474
          %v478 = vadd.f32 %v477, %v475
          %479 = vst [vmem:[%s314] sm:$0xff] %v478
          %v480 = vld [vmem:[#allocation3] sm:$0xff]
          %v481 = vld [vmem:[#allocation3 + $0x8] sm:$0xff]
          %v482 = vld [vmem:[#allocation3 + $0x10] sm:$0xff]
          %v483 = vld [vmem:[#allocation3 + $0x18] sm:$0xff]
          %v484 = vadd.f32 %v480, %v481
          %v485 = vadd.f32 %v484, %v482
          %v486 = vadd.f32 %v485, %v483
          %s487 = scalar_lea.vmem %s314, 8 [#allocation12]
          %488 = vst [vmem:[%s487] sm:$0xff] %v486
          %v489 = vld [vmem:[#allocation4] sm:$0xff]
          %v490 = vld [vmem:[#allocation4 + $0x8] sm:$0xff]
          %v491 = vld [vmem:[#allocation4 + $0x10] sm:$0xff]
          %v492 = vld [vmem:[#allocation4 + $0x18] sm:$0xff]
          %v493 = vadd.f32 %v489, %v490
          %v494 = vadd.f32 %v493, %v491
          %v495 = vadd.f32 %v494, %v492
          %s496 = scalar_lea.vmem %s314, 16 [#allocation12]
          %497 = vst [vmem:[%s496] sm:$0xff] %v495
        $region64: #{tpu_custom_call.1} parent=35 // pred_fallthru
          _
        %s498 = sand.u32 %s150, 1
        %s499 = scalar_lea.sflag [#allocation8], %s498
        %s500 = sand.u32 %s150, 1
        %s501 = smul.addr %s500, 24
        %s502 = scalar_lea.vmem [#allocation12], %s501
        // Predicated region
        $region65: #{tpu_custom_call.1} parent=35 // pred_check
          %p503 = pneg %p160
        $region66: #{tpu_custom_call.1} parent=35 // pred_check_branch
          %505 = sbr.rel (%p503) target = $region68
        $region67: #{tpu_custom_call.1} parent=35 // pred_region
          %s506 = smul.u32 3, %s29
          %s508 = ssub.s32 384, 384
          %509 = vsyncadd %s499, %s508
          %s510 = smul.addr %s506, 128
          %s511 = scalar_lea.hbm %s4, %s510
          %s512 = sshll.u32 %s502, 4
          %s513 = int_to_ptr.vmem [resolvable:$true] %s512
          %518 = dma.vmem_to_hbm [thread:$0]  %s513, 384, %s511, %s499, 128, 128, 8
        $region68: #{tpu_custom_call.1} parent=35 // pred_fallthru
          _
      $region36: #{tpu_custom_call.1} parent=5 // pred_fallthru
        _
      %p519 = scmp.le.s32.totalorder 2, %s20
      // Predicated region
      $region69: #{tpu_custom_call.1} parent=5 // pred_check
        %p520 = pneg %p519
      $region70: #{tpu_custom_call.1} parent=5 // pred_check_branch
        %522 = sbr.rel (%p520) target = $region72
      $region71: #{tpu_custom_call.1} parent=5 // pred_region
        %s523 = ssub.s32 %s20, 2
        // Predicated region
        $region73: #{tpu_custom_call.1} parent=71 // pred_check
          %p524 = pneg %p166
        $region74: #{tpu_custom_call.1} parent=71 // pred_check_branch
          %526 = sbr.rel (%p524) target = $region76
        $region75: #{tpu_custom_call.1} parent=71 // pred_region
          %s527 = sand.u32 %s151, 1
          %s528 = scalar_lea.sflag [#allocation8], %s527
          %s529 = sand.u32 %s151, 1
          %s530 = smul.addr %s529, 24
          %s531 = scalar_lea.vmem [#allocation12], %s530
          %532 = dma.done %s528, 384
        $region76: #{tpu_custom_call.1} parent=71 // pred_fallthru
          _
      $region72: #{tpu_custom_call.1} parent=5 // pred_fallthru
        _
    $region6: #{tpu_custom_call.1} parent=1 // loop_footer
      %s24 = sadd.s32 1, %s20
    $region7: #{tpu_custom_call.1} parent=1 // loop_footer_branch
      %19 = sbr.rel target = $region3
    $region8: #{tpu_custom_call.1} parent=1 // loop_exit
      _
    %533 = vsyncpa [#allocation7], 1
    %s534 = scalar_lea.sflag [#allocation7], 1
    %535 = vsyncpa %s534, 1
    %536 = vsyncpa [#allocation10], 1
    %s537 = scalar_lea.sflag [#allocation10], 1
    %538 = vsyncpa %s537, 1
    %539 = vsyncpa [#allocation8], 1
    %s540 = scalar_lea.sflag [#allocation8], 1
    %541 = vsyncpa %s540, 1

</llo_original>
